<compile_context>
chip_gen: v7x
topology: tpu7x:2x2x1
jax: 0.10.0
libtpu: 0.0.40
codegen_flags: <defaults>
</compile_context>

<pallas_src>
import math
from functools import partial

import jax
import jax.numpy as jnp
from jax.experimental import pallas as pl
from jax.experimental.pallas import tpu as pltpu


def _round_up(x, m):
    return ((x + m - 1) // m) * m


def _largest_divisor_leq(n, cap):
    cap = max(1, min(n, cap))
    for d in range(cap, 0, -1):
        if n % d == 0:
            return d
    return 1


def _floor_mod(x, divisor):
    """Python/PyTorch-style modulo (result takes the divisor's sign) for an int32 array
    and a nonzero compile-time integer divisor.  Uses f32 floor-division because the TPU
    VPU has no integer divide; exact while |x| < ~2**23.  It only runs on the tiny
    diagonal table now, so the single EUP divide per table element is irrelevant."""
    d = float(divisor)
    q = jnp.floor(x.astype(jnp.float32) / d).astype(jnp.int32)
    return x - q * divisor


def _rel_pos_bias_kernel(w_ref, out_ref, *, klen, tq, tk, l_pad, hg,
                         bidirectional, num_buckets, max_distance, bc):
    hi = pl.program_id(0)          # head-group index
    qi = pl.program_id(1)          # q-tile index
    kj = pl.program_id(2)          # k-tile index

    # --- 1-D diagonal table (Toeplitz: bias depends only on rel = k - q) -------------
    # Lane j of the table holds the bias for rel = base - tq + j, where
    # base = kj*tk - qi*tq is rel at the tile origin (GLOBAL offsets, so tiling does not
    # change semantics).  After the strided roll below, output element (q, k) reads lane
    # j = k - q + tq; only lanes [1, tq + tk - 1] are consumed, lane 0 / tail padding are dead.
    base = kj * tk - qi * tq
    j = jax.lax.broadcasted_iota(jnp.int32, (8, l_pad), 1)
    rel = (base - tq) + j

    if bc == 1:
        thresh = klen // 2         # GLOBAL klen
        if thresh > 0:             # torch raises on % 0; klen <= 1 skips the wrap
            rel = jnp.where(rel < -thresh, _floor_mod(rel, thresh), rel)
            rel = jnp.where(rel > thresh, _floor_mod(rel, -thresh), rel)

    # --- _relative_position_bucket (T5 / Mesh-TF), on the tiny table -----------------
    nb = num_buckets
    n = -rel
    if bidirectional:
        nb //= 2
        ret = (n < 0).astype(jnp.int32) * nb
        n = jnp.abs(n)
    else:
        ret = jnp.zeros_like(n)
        n = jnp.maximum(n, 0)
    max_exact = nb // 2
    is_small = n < max_exact
    # clamp to >=1 before log; the "large" branch is only selected where n >= max_exact
    n_safe = jnp.maximum(n, 1).astype(jnp.float32)
    val_if_large = max_exact + (
        jnp.log(n_safe / float(max_exact))
        / math.log(max_distance / max_exact)
        * (nb - max_exact)
    ).astype(jnp.int32)            # trunc toward 0 == torch .to(long) for >= 0
    val_if_large = jnp.minimum(val_if_large, nb - 1)
    bucket = ret + jnp.where(is_small, n, val_if_large)   # (8, l_pad) int32 in [0, num_buckets)

    shift = l_pad - tq             # per-sublane rotate amounts span [l_pad - tq, l_pad - 1]
    for hh in range(hg):
        h = hi * hg + hh           # global head index (dynamic SMEM column read)
        # Gather W[bucket, h] on the diagonal table with a select sweep: num_buckets
        # compares/selects over ~l_pad lanes — negligible next to the tq*tk output.
        t = jnp.full((8, l_pad), w_ref[0, h], dtype=jnp.float32)
        for b in range(1, num_buckets):
            t = jnp.where(bucket == b, w_ref[b, h], t)
        # Toeplitz expansion: sublane-broadcast the table row, then rotate row q by
        # (l_pad - tq + q) lanes (XLU strided roll); lane k of row q then holds the
        # table lane k - q + tq == bias(rel = base + k - q).  Slice to tk lanes (dense,
        # 128-aligned) and store.
        t2 = jnp.broadcast_to(t[0:1, :], (tq, l_pad))
        rolled = pltpu.roll(t2, shift, axis=1, stride=1, stride_axis=0)
        out_ref[hh] = rolled[:, :tk].astype(out_ref.dtype)


def relative_position_bias(weight, qlen, klen, *, bidirectional=True,
                           num_buckets=32, max_distance=128, bc=0,
                           max_tq=256, max_tk=1024, out_dtype=jnp.float32,
                           vmem_budget_bytes=24 * 1024 * 1024):
    """weight: (num_buckets, n_heads) float32.  Returns (1, n_heads, qlen, klen).

    Matches RelativePositionBias.forward(qlen, klen, bc).  bc==1 with klen<=1 skips the
    wrap (PyTorch would raise).  Pass out_dtype=jnp.bfloat16 to halve HBM writeback if
    the consumer adds the bias to bf16 logits.
    """
    num_buckets_w, n_heads = weight.shape
    assert num_buckets_w == num_buckets
    itemsize = jnp.dtype(out_dtype).itemsize

    # Lane-dense tiling: tk is always a multiple of 128 and tq a multiple of 8; the
    # q/k extents are padded and the result sliced (no full-dim fallback blocks).
    max_tq = max(8, (max_tq // 8) * 8)
    max_tk = max(128, (max_tk // 128) * 128)
    tq = min(max_tq, _round_up(qlen, 8))
    tk = min(max_tk, _round_up(klen, 128))
    qlen_pad = _round_up(qlen, tq)
    klen_pad = _round_up(klen, tk)
    nq, nk = qlen_pad // tq, klen_pad // tk

    l_pad = _round_up(tq + tk, 128)            # diagonal-table length (lanes)

    # Head-group size: largest divisor of n_heads whose double-buffered output block
    # plus in-kernel temporaries (broadcast + rolled table) fits the VMEM budget
    # (budget chosen to be safe within v7x's 64 MiB/TC).
    temp_bytes = 3 * tq * l_pad * 4

    def fits(h):
        return 2 * h * tq * tk * itemsize + temp_bytes <= vmem_budget_bytes

    hg = n_heads
    while hg > 1 and not fits(hg):
        hg = _largest_divisor_leq(n_heads, hg - 1)
    # Megacore: a single-(q,k)-tile grid would leave v7x's second TensorCore idle;
    # split heads across the grid in that case (neutral on single-TC v5e/v6e).
    if nq * nk == 1 and n_heads > 1 and hg == n_heads:
        hg = _largest_divisor_leq(n_heads, n_heads // 2)
    nh = n_heads // hg
    grid = (nh, nq, nk)

    out_block_bytes = hg * tq * tk * itemsize
    vmem_limit = int(min(48 * 1024 * 1024,
                         max(16 * 1024 * 1024,
                             2 * out_block_bytes + 2 * temp_bytes + (2 << 20))))

    kernel = partial(
        _rel_pos_bias_kernel,
        klen=klen, tq=tq, tk=tk, l_pad=l_pad, hg=hg,
        bidirectional=bidirectional, num_buckets=num_buckets,
        max_distance=max_distance, bc=bc)

    out_bytes = n_heads * qlen_pad * klen_pad * itemsize
    table_elems = nh * nq * nk * 8 * l_pad
    cost = pl.CostEstimate(
        flops=int(n_heads * qlen_pad * klen_pad
                  + table_elems * (20 + num_buckets * (1 + hg))),
        transcendentals=int(table_elems),
        bytes_accessed=int(out_bytes + weight.size * weight.dtype.itemsize))

    out = pl.pallas_call(
        kernel,
        out_shape=jax.ShapeDtypeStruct((n_heads, qlen_pad, klen_pad), out_dtype),
        grid=grid,
        in_specs=[
            # Small table: keep the whole thing resident in SMEM for cheap scalar reads.
            pl.BlockSpec(memory_space=pltpu.MemorySpace.SMEM),
        ],
        out_specs=pl.BlockSpec((hg, tq, tk), lambda h, i, j: (h, i, j)),
        compiler_params=pltpu.CompilerParams(
            dimension_semantics=("parallel", "parallel", "parallel"),
            vmem_limit_bytes=vmem_limit),
        cost_estimate=cost,
    )(weight)

    out = out[:, :qlen, :klen]                 # drop padding
    return out[None]                           # (1, n_heads, qlen, klen)


def _reference(weight, qlen, klen, *, bidirectional=True, num_buckets=32,
               max_distance=128, bc=0):
    """Pure-JAX reference mirroring the PyTorch module, for sanity checking."""
    ctx = jnp.arange(qlen, dtype=jnp.int32)[:, None]
    mem = jnp.arange(klen, dtype=jnp.int32)[None, :]
    rel = mem - ctx
    if bc == 1:
        thresh = klen // 2
        if thresh > 0:
            rel = jnp.where(rel < -thresh, jnp.mod(rel, thresh), rel)
            rel = jnp.where(rel > thresh, jnp.mod(rel, -thresh), rel)
    nb = num_buckets
    n = -rel
    if bidirectional:
        nb //= 2
        ret = (n < 0).astype(jnp.int32) * nb
        n = jnp.abs(n)
    else:
        ret = jnp.zeros_like(n)
        n = jnp.maximum(n, 0)
    max_exact = nb // 2
    is_small = n < max_exact
    n_safe = jnp.maximum(n, 1).astype(jnp.float32)
    val_if_large = max_exact + (
        jnp.log(n_safe / float(max_exact)) / math.log(max_distance / max_exact)
        * (nb - max_exact)
    ).astype(jnp.int32)
    val_if_large = jnp.minimum(val_if_large, nb - 1)
    bucket = ret + jnp.where(is_small, n, val_if_large)
    vals = weight[bucket]                        # (q, k, h)
    return jnp.transpose(vals, (2, 0, 1))[None]  # (1, h, q, k)


if __name__ == "__main__":
    num_buckets, max_distance = 32, 128
    key = jax.random.PRNGKey(0)

    def check(n_heads, qlen, klen, *, bc=0, bidirectional=True,
              max_tq=256, max_tk=1024):
        w = jax.random.normal(
            jax.random.fold_in(key, 131 * n_heads + 7 * qlen + klen + bc),
            (num_buckets, n_heads), dtype=jnp.float32)
        out = relative_position_bias(w, qlen, klen, bidirectional=bidirectional,
                                     num_buckets=num_buckets,
                                     max_distance=max_distance, bc=bc,
                                     max_tq=max_tq, max_tk=max_tk)
        out = jax.block_until_ready(out)
        ref = _reference(w, qlen, klen, bidirectional=bidirectional,
                         num_buckets=num_buckets, max_distance=max_distance, bc=bc)
        assert out.shape == (1, n_heads, qlen, klen), out.shape
        assert jnp.allclose(out, ref, atol=1e-6), \
            f"mismatch vs reference (heads={n_heads}, q={qlen}, k={klen}, bc={bc}, bi={bidirectional})"

    # module defaults (n_heads=2, qlen=klen=8): single padded tile, heads split across
    # the grid so v7x's second TensorCore has work
    check(2, 8, 8)
    # multi-tile 2x2 (q,k) grid with lane-dense 128-wide k blocks; global-offset tables
    check(2, 128, 256, max_tq=64, max_tk=128)
    # bc==1 wrap path (thresh = global klen // 2, independent of tiling)
    check(2, 128, 256, bc=1, max_tq=64, max_tk=128)
    # unaligned shapes -> pad-and-slice path
    check(2, 60, 200)
    # bc==1 with a non-power-of-two thresh (float floor-mod path)
    check(2, 48, 70, bc=1)
    # unidirectional bucket branch, 4 heads (head-grouped grid, dynamic head indexing)
    check(4, 16, 64, bidirectional=False)

    print("KERNEL_OK")
</pallas_src>

<mosaic_0001>
module attributes {stable_mosaic.version = 11 : i64} {
  func.func @_rel_pos_bias_kernel(%arg0: i32, %arg1: i32, %arg2: i32, %arg3: memref<32x2xf32, #tpu.memory_space<smem>>, %arg4: memref<1x8x128xf32, #tpu.memory_space<vmem>>) attributes {dimension_semantics = [#tpu.dimension_semantics<parallel>, #tpu.dimension_semantics<parallel>, #tpu.dimension_semantics<parallel>], iteration_bounds = array<i64: 2, 1, 1>, scalar_prefetch = 0 : i64, scratch_operands = 0 : i64, tpu.core_type = #tpu.core_type<tc>, window_params = [{transform_indices = @transform_0, window_bounds = array<i64: 32, 2>}, {transform_indices = @transform_1, window_bounds = array<i64: 1, 8, 128>}]} {
    %c128_i32 = arith.constant 128 : i32
    %0 = arith.muli %arg2, %c128_i32 : i32
    %c8_i32 = arith.constant 8 : i32
    %1 = arith.muli %arg1, %c8_i32 : i32
    %2 = arith.subi %0, %1 : i32
    %3 = tpu.iota {dimensions = array<i32: 1>} : vector<8x256xi32>
    %c8_i32_0 = arith.constant 8 : i32
    %4 = arith.subi %2, %c8_i32_0 : i32
    %5 = vector.broadcast %4 : i32 to vector<8x256xi32>
    %6 = arith.addi %5, %3 : vector<8x256xi32>
    %c0_i32 = arith.constant 0 : i32
    %7 = vector.broadcast %c0_i32 : i32 to vector<8x256xi32>
    %8 = arith.subi %7, %6 : vector<8x256xi32>
    %c0_i32_1 = arith.constant 0 : i32
    %9 = vector.broadcast %c0_i32_1 : i32 to vector<8x256xi32>
    %10 = arith.cmpi slt, %8, %9 : vector<8x256xi32>
    %11 = arith.extui %10 : vector<8x256xi1> to vector<8x256xi32>
    %c16_i32 = arith.constant 16 : i32
    %12 = vector.broadcast %c16_i32 : i32 to vector<8x256xi32>
    %13 = arith.muli %11, %12 : vector<8x256xi32>
    %14 = math.absi %8 : vector<8x256xi32>
    %c8_i32_2 = arith.constant 8 : i32
    %15 = vector.broadcast %c8_i32_2 : i32 to vector<8x256xi32>
    %16 = arith.cmpi slt, %14, %15 : vector<8x256xi32>
    %c1_i32 = arith.constant 1 : i32
    %17 = vector.broadcast %c1_i32 : i32 to vector<8x256xi32>
    %18 = arith.maxsi %14, %17 : vector<8x256xi32>
    %19 = arith.sitofp %18 : vector<8x256xi32> to vector<8x256xf32>
    %cst = arith.constant 8.000000e+00 : f32
    %20 = vector.broadcast %cst : f32 to vector<8x256xf32>
    %21 = arith.divf %19, %20 : vector<8x256xf32>
    %22 = math.log %21 : vector<8x256xf32>
    %cst_3 = arith.constant 2.77258873 : f32
    %23 = vector.broadcast %cst_3 : f32 to vector<8x256xf32>
    %24 = arith.divf %22, %23 : vector<8x256xf32>
    %cst_4 = arith.constant 8.000000e+00 : f32
    %25 = vector.broadcast %cst_4 : f32 to vector<8x256xf32>
    %26 = arith.mulf %24, %25 : vector<8x256xf32>
    %27 = arith.fptosi %26 : vector<8x256xf32> to vector<8x256xi32>
    %c8_i32_5 = arith.constant 8 : i32
    %28 = vector.broadcast %c8_i32_5 : i32 to vector<8x256xi32>
    %29 = arith.addi %28, %27 : vector<8x256xi32>
    %c15_i32 = arith.constant 15 : i32
    %30 = vector.broadcast %c15_i32 : i32 to vector<8x256xi32>
    %31 = arith.minsi %29, %30 : vector<8x256xi32>
    %32 = arith.select %16, %14, %31 : vector<8x256xi1>, vector<8x256xi32>
    %33 = arith.addi %13, %32 : vector<8x256xi32>
    %c1_i32_6 = arith.constant 1 : i32
    %34 = arith.muli %arg0, %c1_i32_6 : i32
    %c0_i32_7 = arith.constant 0 : i32
    %35 = arith.addi %34, %c0_i32_7 : i32
    %c0 = arith.constant 0 : index
    %36 = arith.index_cast %35 : i32 to index
    %37 = memref.load %arg3[%c0, %36] : memref<32x2xf32, #tpu.memory_space<smem>>
    %38 = vector.broadcast %37 : f32 to vector<8x256xf32>
    %c1_i32_8 = arith.constant 1 : i32
    %39 = vector.broadcast %c1_i32_8 : i32 to vector<8x256xi32>
    %40 = arith.cmpi eq, %33, %39 : vector<8x256xi32>
    %c1 = arith.constant 1 : index
    %41 = arith.index_cast %35 : i32 to index
    %42 = memref.load %arg3[%c1, %41] : memref<32x2xf32, #tpu.memory_space<smem>>
    %43 = vector.broadcast %42 : f32 to vector<8x256xf32>
    %44 = arith.select %40, %43, %38 : vector<8x256xi1>, vector<8x256xf32>
    %c2_i32 = arith.constant 2 : i32
    %45 = vector.broadcast %c2_i32 : i32 to vector<8x256xi32>
    %46 = arith.cmpi eq, %33, %45 : vector<8x256xi32>
    %c2 = arith.constant 2 : index
    %47 = arith.index_cast %35 : i32 to index
    %48 = memref.load %arg3[%c2, %47] : memref<32x2xf32, #tpu.memory_space<smem>>
    %49 = vector.broadcast %48 : f32 to vector<8x256xf32>
    %50 = arith.select %46, %49, %44 : vector<8x256xi1>, vector<8x256xf32>
    %c3_i32 = arith.constant 3 : i32
    %51 = vector.broadcast %c3_i32 : i32 to vector<8x256xi32>
    %52 = arith.cmpi eq, %33, %51 : vector<8x256xi32>
    %c3 = arith.constant 3 : index
    %53 = arith.index_cast %35 : i32 to index
    %54 = memref.load %arg3[%c3, %53] : memref<32x2xf32, #tpu.memory_space<smem>>
    %55 = vector.broadcast %54 : f32 to vector<8x256xf32>
    %56 = arith.select %52, %55, %50 : vector<8x256xi1>, vector<8x256xf32>
    %c4_i32 = arith.constant 4 : i32
    %57 = vector.broadcast %c4_i32 : i32 to vector<8x256xi32>
    %58 = arith.cmpi eq, %33, %57 : vector<8x256xi32>
    %c4 = arith.constant 4 : index
    %59 = arith.index_cast %35 : i32 to index
    %60 = memref.load %arg3[%c4, %59] : memref<32x2xf32, #tpu.memory_space<smem>>
    %61 = vector.broadcast %60 : f32 to vector<8x256xf32>
    %62 = arith.select %58, %61, %56 : vector<8x256xi1>, vector<8x256xf32>
    %c5_i32 = arith.constant 5 : i32
    %63 = vector.broadcast %c5_i32 : i32 to vector<8x256xi32>
    %64 = arith.cmpi eq, %33, %63 : vector<8x256xi32>
    %c5 = arith.constant 5 : index
    %65 = arith.index_cast %35 : i32 to index
    %66 = memref.load %arg3[%c5, %65] : memref<32x2xf32, #tpu.memory_space<smem>>
    %67 = vector.broadcast %66 : f32 to vector<8x256xf32>
    %68 = arith.select %64, %67, %62 : vector<8x256xi1>, vector<8x256xf32>
    %c6_i32 = arith.constant 6 : i32
    %69 = vector.broadcast %c6_i32 : i32 to vector<8x256xi32>
    %70 = arith.cmpi eq, %33, %69 : vector<8x256xi32>
    %c6 = arith.constant 6 : index
    %71 = arith.index_cast %35 : i32 to index
    %72 = memref.load %arg3[%c6, %71] : memref<32x2xf32, #tpu.memory_space<smem>>
    %73 = vector.broadcast %72 : f32 to vector<8x256xf32>
    %74 = arith.select %70, %73, %68 : vector<8x256xi1>, vector<8x256xf32>
    %c7_i32 = arith.constant 7 : i32
    %75 = vector.broadcast %c7_i32 : i32 to vector<8x256xi32>
    %76 = arith.cmpi eq, %33, %75 : vector<8x256xi32>
    %c7 = arith.constant 7 : index
    %77 = arith.index_cast %35 : i32 to index
    %78 = memref.load %arg3[%c7, %77] : memref<32x2xf32, #tpu.memory_space<smem>>
    %79 = vector.broadcast %78 : f32 to vector<8x256xf32>
    %80 = arith.select %76, %79, %74 : vector<8x256xi1>, vector<8x256xf32>
    %c8_i32_9 = arith.constant 8 : i32
    %81 = vector.broadcast %c8_i32_9 : i32 to vector<8x256xi32>
    %82 = arith.cmpi eq, %33, %81 : vector<8x256xi32>
    %c8 = arith.constant 8 : index
    %83 = arith.index_cast %35 : i32 to index
    %84 = memref.load %arg3[%c8, %83] : memref<32x2xf32, #tpu.memory_space<smem>>
    %85 = vector.broadcast %84 : f32 to vector<8x256xf32>
    %86 = arith.select %82, %85, %80 : vector<8x256xi1>, vector<8x256xf32>
    %c9_i32 = arith.constant 9 : i32
    %87 = vector.broadcast %c9_i32 : i32 to vector<8x256xi32>
    %88 = arith.cmpi eq, %33, %87 : vector<8x256xi32>
    %c9 = arith.constant 9 : index
    %89 = arith.index_cast %35 : i32 to index
    %90 = memref.load %arg3[%c9, %89] : memref<32x2xf32, #tpu.memory_space<smem>>
    %91 = vector.broadcast %90 : f32 to vector<8x256xf32>
    %92 = arith.select %88, %91, %86 : vector<8x256xi1>, vector<8x256xf32>
    %c10_i32 = arith.constant 10 : i32
    %93 = vector.broadcast %c10_i32 : i32 to vector<8x256xi32>
    %94 = arith.cmpi eq, %33, %93 : vector<8x256xi32>
    %c10 = arith.constant 10 : index
    %95 = arith.index_cast %35 : i32 to index
    %96 = memref.load %arg3[%c10, %95] : memref<32x2xf32, #tpu.memory_space<smem>>
    %97 = vector.broadcast %96 : f32 to vector<8x256xf32>
    %98 = arith.select %94, %97, %92 : vector<8x256xi1>, vector<8x256xf32>
    %c11_i32 = arith.constant 11 : i32
    %99 = vector.broadcast %c11_i32 : i32 to vector<8x256xi32>
    %100 = arith.cmpi eq, %33, %99 : vector<8x256xi32>
    %c11 = arith.constant 11 : index
    %101 = arith.index_cast %35 : i32 to index
    %102 = memref.load %arg3[%c11, %101] : memref<32x2xf32, #tpu.memory_space<smem>>
    %103 = vector.broadcast %102 : f32 to vector<8x256xf32>
    %104 = arith.select %100, %103, %98 : vector<8x256xi1>, vector<8x256xf32>
    %c12_i32 = arith.constant 12 : i32
    %105 = vector.broadcast %c12_i32 : i32 to vector<8x256xi32>
    %106 = arith.cmpi eq, %33, %105 : vector<8x256xi32>
    %c12 = arith.constant 12 : index
    %107 = arith.index_cast %35 : i32 to index
    %108 = memref.load %arg3[%c12, %107] : memref<32x2xf32, #tpu.memory_space<smem>>
    %109 = vector.broadcast %108 : f32 to vector<8x256xf32>
    %110 = arith.select %106, %109, %104 : vector<8x256xi1>, vector<8x256xf32>
    %c13_i32 = arith.constant 13 : i32
    %111 = vector.broadcast %c13_i32 : i32 to vector<8x256xi32>
    %112 = arith.cmpi eq, %33, %111 : vector<8x256xi32>
    %c13 = arith.constant 13 : index
    %113 = arith.index_cast %35 : i32 to index
    %114 = memref.load %arg3[%c13, %113] : memref<32x2xf32, #tpu.memory_space<smem>>
    %115 = vector.broadcast %114 : f32 to vector<8x256xf32>
    %116 = arith.select %112, %115, %110 : vector<8x256xi1>, vector<8x256xf32>
    %c14_i32 = arith.constant 14 : i32
    %117 = vector.broadcast %c14_i32 : i32 to vector<8x256xi32>
    %118 = arith.cmpi eq, %33, %117 : vector<8x256xi32>
    %c14 = arith.constant 14 : index
    %119 = arith.index_cast %35 : i32 to index
    %120 = memref.load %arg3[%c14, %119] : memref<32x2xf32, #tpu.memory_space<smem>>
    %121 = vector.broadcast %120 : f32 to vector<8x256xf32>
    %122 = arith.select %118, %121, %116 : vector<8x256xi1>, vector<8x256xf32>
    %c15_i32_10 = arith.constant 15 : i32
    %123 = vector.broadcast %c15_i32_10 : i32 to vector<8x256xi32>
    %124 = arith.cmpi eq, %33, %123 : vector<8x256xi32>
    %c15 = arith.constant 15 : index
    %125 = arith.index_cast %35 : i32 to index
    %126 = memref.load %arg3[%c15, %125] : memref<32x2xf32, #tpu.memory_space<smem>>
    %127 = vector.broadcast %126 : f32 to vector<8x256xf32>
    %128 = arith.select %124, %127, %122 : vector<8x256xi1>, vector<8x256xf32>
    %c16_i32_11 = arith.constant 16 : i32
    %129 = vector.broadcast %c16_i32_11 : i32 to vector<8x256xi32>
    %130 = arith.cmpi eq, %33, %129 : vector<8x256xi32>
    %c16 = arith.constant 16 : index
    %131 = arith.index_cast %35 : i32 to index
    %132 = memref.load %arg3[%c16, %131] : memref<32x2xf32, #tpu.memory_space<smem>>
    %133 = vector.broadcast %132 : f32 to vector<8x256xf32>
    %134 = arith.select %130, %133, %128 : vector<8x256xi1>, vector<8x256xf32>
    %c17_i32 = arith.constant 17 : i32
    %135 = vector.broadcast %c17_i32 : i32 to vector<8x256xi32>
    %136 = arith.cmpi eq, %33, %135 : vector<8x256xi32>
    %c17 = arith.constant 17 : index
    %137 = arith.index_cast %35 : i32 to index
    %138 = memref.load %arg3[%c17, %137] : memref<32x2xf32, #tpu.memory_space<smem>>
    %139 = vector.broadcast %138 : f32 to vector<8x256xf32>
    %140 = arith.select %136, %139, %134 : vector<8x256xi1>, vector<8x256xf32>
    %c18_i32 = arith.constant 18 : i32
    %141 = vector.broadcast %c18_i32 : i32 to vector<8x256xi32>
    %142 = arith.cmpi eq, %33, %141 : vector<8x256xi32>
    %c18 = arith.constant 18 : index
    %143 = arith.index_cast %35 : i32 to index
    %144 = memref.load %arg3[%c18, %143] : memref<32x2xf32, #tpu.memory_space<smem>>
    %145 = vector.broadcast %144 : f32 to vector<8x256xf32>
    %146 = arith.select %142, %145, %140 : vector<8x256xi1>, vector<8x256xf32>
    %c19_i32 = arith.constant 19 : i32
    %147 = vector.broadcast %c19_i32 : i32 to vector<8x256xi32>
    %148 = arith.cmpi eq, %33, %147 : vector<8x256xi32>
    %c19 = arith.constant 19 : index
    %149 = arith.index_cast %35 : i32 to index
    %150 = memref.load %arg3[%c19, %149] : memref<32x2xf32, #tpu.memory_space<smem>>
    %151 = vector.broadcast %150 : f32 to vector<8x256xf32>
    %152 = arith.select %148, %151, %146 : vector<8x256xi1>, vector<8x256xf32>
    %c20_i32 = arith.constant 20 : i32
    %153 = vector.broadcast %c20_i32 : i32 to vector<8x256xi32>
    %154 = arith.cmpi eq, %33, %153 : vector<8x256xi32>
    %c20 = arith.constant 20 : index
    %155 = arith.index_cast %35 : i32 to index
    %156 = memref.load %arg3[%c20, %155] : memref<32x2xf32, #tpu.memory_space<smem>>
    %157 = vector.broadcast %156 : f32 to vector<8x256xf32>
    %158 = arith.select %154, %157, %152 : vector<8x256xi1>, vector<8x256xf32>
    %c21_i32 = arith.constant 21 : i32
    %159 = vector.broadcast %c21_i32 : i32 to vector<8x256xi32>
    %160 = arith.cmpi eq, %33, %159 : vector<8x256xi32>
    %c21 = arith.constant 21 : index
    %161 = arith.index_cast %35 : i32 to index
    %162 = memref.load %arg3[%c21, %161] : memref<32x2xf32, #tpu.memory_space<smem>>
    %163 = vector.broadcast %162 : f32 to vector<8x256xf32>
    %164 = arith.select %160, %163, %158 : vector<8x256xi1>, vector<8x256xf32>
    %c22_i32 = arith.constant 22 : i32
    %165 = vector.broadcast %c22_i32 : i32 to vector<8x256xi32>
    %166 = arith.cmpi eq, %33, %165 : vector<8x256xi32>
    %c22 = arith.constant 22 : index
    %167 = arith.index_cast %35 : i32 to index
    %168 = memref.load %arg3[%c22, %167] : memref<32x2xf32, #tpu.memory_space<smem>>
    %169 = vector.broadcast %168 : f32 to vector<8x256xf32>
    %170 = arith.select %166, %169, %164 : vector<8x256xi1>, vector<8x256xf32>
    %c23_i32 = arith.constant 23 : i32
    %171 = vector.broadcast %c23_i32 : i32 to vector<8x256xi32>
    %172 = arith.cmpi eq, %33, %171 : vector<8x256xi32>
    %c23 = arith.constant 23 : index
    %173 = arith.index_cast %35 : i32 to index
    %174 = memref.load %arg3[%c23, %173] : memref<32x2xf32, #tpu.memory_space<smem>>
    %175 = vector.broadcast %174 : f32 to vector<8x256xf32>
    %176 = arith.select %172, %175, %170 : vector<8x256xi1>, vector<8x256xf32>
    %c24_i32 = arith.constant 24 : i32
    %177 = vector.broadcast %c24_i32 : i32 to vector<8x256xi32>
    %178 = arith.cmpi eq, %33, %177 : vector<8x256xi32>
    %c24 = arith.constant 24 : index
    %179 = arith.index_cast %35 : i32 to index
    %180 = memref.load %arg3[%c24, %179] : memref<32x2xf32, #tpu.memory_space<smem>>
    %181 = vector.broadcast %180 : f32 to vector<8x256xf32>
    %182 = arith.select %178, %181, %176 : vector<8x256xi1>, vector<8x256xf32>
    %c25_i32 = arith.constant 25 : i32
    %183 = vector.broadcast %c25_i32 : i32 to vector<8x256xi32>
    %184 = arith.cmpi eq, %33, %183 : vector<8x256xi32>
    %c25 = arith.constant 25 : index
    %185 = arith.index_cast %35 : i32 to index
    %186 = memref.load %arg3[%c25, %185] : memref<32x2xf32, #tpu.memory_space<smem>>
    %187 = vector.broadcast %186 : f32 to vector<8x256xf32>
    %188 = arith.select %184, %187, %182 : vector<8x256xi1>, vector<8x256xf32>
    %c26_i32 = arith.constant 26 : i32
    %189 = vector.broadcast %c26_i32 : i32 to vector<8x256xi32>
    %190 = arith.cmpi eq, %33, %189 : vector<8x256xi32>
    %c26 = arith.constant 26 : index
    %191 = arith.index_cast %35 : i32 to index
    %192 = memref.load %arg3[%c26, %191] : memref<32x2xf32, #tpu.memory_space<smem>>
    %193 = vector.broadcast %192 : f32 to vector<8x256xf32>
    %194 = arith.select %190, %193, %188 : vector<8x256xi1>, vector<8x256xf32>
    %c27_i32 = arith.constant 27 : i32
    %195 = vector.broadcast %c27_i32 : i32 to vector<8x256xi32>
    %196 = arith.cmpi eq, %33, %195 : vector<8x256xi32>
    %c27 = arith.constant 27 : index
    %197 = arith.index_cast %35 : i32 to index
    %198 = memref.load %arg3[%c27, %197] : memref<32x2xf32, #tpu.memory_space<smem>>
    %199 = vector.broadcast %198 : f32 to vector<8x256xf32>
    %200 = arith.select %196, %199, %194 : vector<8x256xi1>, vector<8x256xf32>
    %c28_i32 = arith.constant 28 : i32
    %201 = vector.broadcast %c28_i32 : i32 to vector<8x256xi32>
    %202 = arith.cmpi eq, %33, %201 : vector<8x256xi32>
    %c28 = arith.constant 28 : index
    %203 = arith.index_cast %35 : i32 to index
    %204 = memref.load %arg3[%c28, %203] : memref<32x2xf32, #tpu.memory_space<smem>>
    %205 = vector.broadcast %204 : f32 to vector<8x256xf32>
    %206 = arith.select %202, %205, %200 : vector<8x256xi1>, vector<8x256xf32>
    %c29_i32 = arith.constant 29 : i32
    %207 = vector.broadcast %c29_i32 : i32 to vector<8x256xi32>
    %208 = arith.cmpi eq, %33, %207 : vector<8x256xi32>
    %c29 = arith.constant 29 : index
    %209 = arith.index_cast %35 : i32 to index
    %210 = memref.load %arg3[%c29, %209] : memref<32x2xf32, #tpu.memory_space<smem>>
    %211 = vector.broadcast %210 : f32 to vector<8x256xf32>
    %212 = arith.select %208, %211, %206 : vector<8x256xi1>, vector<8x256xf32>
    %c30_i32 = arith.constant 30 : i32
    %213 = vector.broadcast %c30_i32 : i32 to vector<8x256xi32>
    %214 = arith.cmpi eq, %33, %213 : vector<8x256xi32>
    %c30 = arith.constant 30 : index
    %215 = arith.index_cast %35 : i32 to index
    %216 = memref.load %arg3[%c30, %215] : memref<32x2xf32, #tpu.memory_space<smem>>
    %217 = vector.broadcast %216 : f32 to vector<8x256xf32>
    %218 = arith.select %214, %217, %212 : vector<8x256xi1>, vector<8x256xf32>
    %c31_i32 = arith.constant 31 : i32
    %219 = vector.broadcast %c31_i32 : i32 to vector<8x256xi32>
    %220 = arith.cmpi eq, %33, %219 : vector<8x256xi32>
    %c31 = arith.constant 31 : index
    %221 = arith.index_cast %35 : i32 to index
    %222 = memref.load %arg3[%c31, %221] : memref<32x2xf32, #tpu.memory_space<smem>>
    %223 = vector.broadcast %222 : f32 to vector<8x256xf32>
    %224 = arith.select %220, %223, %218 : vector<8x256xi1>, vector<8x256xf32>
    %225 = vector.extract_strided_slice %224 {offsets = [0, 0], sizes = [1, 256], strides = [1, 1]} : vector<8x256xf32> to vector<1x256xf32>
    %226 = vector.shape_cast %225 : vector<1x256xf32> to vector<1x256xf32>
    %227 = vector.broadcast %226 : vector<1x256xf32> to vector<8x256xf32>
    %c248_i32 = arith.constant 248 : i32
    %228 = tpu.dynamic_rotate %227 by %c248_i32 dim 1 {stride = 1 : si32, stride_dimension = 0 : si32} : vector<8x256xf32>, i32 -> vector<8x256xf32>
    %229 = vector.extract_strided_slice %228 {offsets = [0, 0], sizes = [8, 128], strides = [1, 1]} : vector<8x256xf32> to vector<8x128xf32>
    %c0_12 = arith.constant 0 : index
    %c0_13 = arith.constant 0 : index
    %c0_14 = arith.constant 0 : index
    %230 = vector.load %arg4[%c0_12, %c0_13, %c0_14] : memref<1x8x128xf32, #tpu.memory_space<vmem>>, vector<1x8x128xf32>
    %231 = vector.shape_cast %230 : vector<1x8x128xf32> to vector<8x128xf32>
    %232 = vector.shape_cast %229 : vector<8x128xf32> to vector<1x8x128xf32>
    tpu.vector_store %arg4[%c0_12, %c0_13, %c0_14], %232 {strides = array<i32>} : memref<1x8x128xf32, #tpu.memory_space<vmem>>, vector<1x8x128xf32>,
    return
  }
  func.func @transform_0(%arg0: i32, %arg1: i32, %arg2: i32) -> (i32, i32) {
    %c0_i32 = arith.constant 0 : i32
    %c0_i32_0 = arith.constant 0 : i32
    %c0_i32_1 = arith.constant 0 : i32
    return %c0_i32, %c0_i32_0 : i32, i32
  }
  func.func @transform_1(%arg0: i32, %arg1: i32, %arg2: i32) -> (i32, i32, i32) {
    %c0_i32 = arith.constant 0 : i32
    return %arg0, %arg1, %arg2 : i32, i32, i32
  }
}

</mosaic_0001>

<llo_original>
// kernel: tpu_custom_call.1
$region0: #{tpu_custom_call.1}
  #allocation0 [shape = 'u32[]', space=smem, size = 0x4, offset = 0x4, fixed_abs, tag = 'smem constant byte address 0x4 - core index']
  #allocation1 [shape = 'u32[144,128]{1,0:T(1,128)}', space=vmem, size = 0x12000, scoped, tag = 'internal scratch']
  %s0 = inlined_call_operand.vmem [shape: f32[32,2], index: 0, kind: input, shape index: {}]
  %s1 = inlined_call_operand.hbm [shape: f32[2,8,128], index: 1, kind: output, shape index: {}]
  %s2 = sld [smem:[#allocation0]]
  $region41: #{tpu_custom_call.1} parent=0
    _
  %s4 = ssub.s32 1, %s2
  %s5 = scalar_select 0, %s4, %s2
  $region1: #{tpu_custom_call.1} parent=0
    #allocation2 [shape = 'u8[16384]{0}', space=smem, size = 0x4000, scoped, tag = 'input window, operand 0, single buffered']
    #allocation3 [shape = 's32[2]{0}', space=sflag, size = 0x8, scoped, tag = 'scoped memory for tpu_custom_call.1']
    #allocation4 [shape = 's32[2]{0}', space=sflag, size = 0x8, scoped, tag = 'scoped memory for tpu_custom_call.1']
    #allocation5 [shape = 'u8[8192]{0}', space=vmem, size = 0x2000, scoped, tag = 'output window, operand 0']
    %6 = vsyncpa [#allocation4], 0
    %7 = vsyncpa [#allocation3], 0
    %s8 = scalar_lea.sflag [#allocation3], 1
    %9 = vsyncpa %s8, 0
    loop: start=0, step=1, limit=4
    $region2: #{tpu_custom_call.1} parent=1 // loop_pre_header
      _
    $region3: #{tpu_custom_call.1} parent=1 // loop_header
      %s11 = sphi 0, %s15
      %p12 = scmp.ge.s32.totalorder %s11, 4
      %s18 = sphi 0, %s37
      %s19 = sphi 0, %s33
      %s20 = sphi 0, %s29
      %s21 = sphi 0, %s18
      %s22 = sphi 0, %s19
      %s23 = sphi 0, %s20
      %s24 = sphi 0, %s21
      %s25 = sphi 0, %s22
      %s26 = sphi 0, %s23
      %s38 = sphi 0, %s38
      %s40 = sphi 0, %s38
      %s41 = sphi 0, %s40
      %s55 = sphi 0, %s41
      %s65 = sphi 0, %s67
      %s68 = sphi 0, %s65
      %s69 = sphi 0, %s68
      %s85 = sphi 0, %s69
    $region4: #{tpu_custom_call.1} parent=1 // loop_header_branch
      %14 = sbr.rel (%p12) target = $region8
    $region5: #{tpu_custom_call.1} parent=1 // loop_body
      %s16 = ssub.s32 %s11, 1
      %s17 = ssub.s32 %s11, 2
      %s27 = sadd.s32 1, %s20
      %p28 = scmp.ge.s32.totalorder %s27, 1
      %s29 = scalar_select %p28, 0, %s27
      %s30 = sadd.s32 1, %s19
      %s31 = scalar_select %p28, %s30, %s19
      %p32 = scmp.ge.s32.totalorder %s31, 1
      %s33 = scalar_select %p32, 0, %s31
      %s34 = sadd.s32 1, %s18
      %s35 = scalar_select %p32, %s34, %s18
      %p36 = scmp.ge.s32.totalorder %s35, 2
      %s37 = scalar_select %p36, 0, %s35
      %s39 = sadd.s32 %s38, 1
      %p42 = scmp.eq.s32.totalorder %s11, 1
      %p43 = scmp.ne.s32.totalorder %s38, %s40
      %p44 = scmp.eq.s32.totalorder %s11, 0
      %p45 = por %p43, %p44
      %p46 = scmp.ne.s32.totalorder %s38, %s40
      %p47 = scmp.eq.s32.totalorder %s16, 1
      %p48 = por %p46, %p47
      %p49 = scmp.ne.s32.totalorder %s40, %s41
      %p50 = scmp.eq.s32.totalorder %s16, 0
      %p51 = por %p49, %p50
      %p52 = scmp.ne.s32.totalorder %s40, %s41
      %p53 = scmp.eq.s32.totalorder %s17, 1
      %p54 = por %p52, %p53
      %p56 = scmp.ne.s32.totalorder %s41, %s55
      %p57 = scmp.eq.s32.totalorder %s17, 0
      %p58 = por %p56, %p57
      %s59 = ssub.s32 %s18, %s37
      %s60 = ssub.s32 %s19, %s33
      %s61 = sor.u32 %s59, %s60
      %s62 = ssub.s32 %s20, %s29
      %s63 = sor.u32 %s61, %s62
      %p64 = scmp.eq.s32.totalorder %s63, 0
      %s66 = sadd.s32 %s65, 1
      %s67 = scalar_select %p64, %s65, %s66
      %p70 = pneg %p64
      %p71 = scmp.eq.s32.totalorder %s11, 1
      %p72 = por %p70, %p71
      %p73 = scmp.ne.s32.totalorder %s65, %s68
      %p74 = scmp.eq.s32.totalorder %s11, 0
      %p75 = por %p73, %p74
      %p76 = scmp.ne.s32.totalorder %s65, %s68
      %p77 = scmp.eq.s32.totalorder %s16, 1
      %p78 = por %p76, %p77
      %p79 = scmp.ne.s32.totalorder %s68, %s69
      %p80 = scmp.eq.s32.totalorder %s16, 0
      %p81 = por %p79, %p80
      %p82 = scmp.ne.s32.totalorder %s68, %s69
      %p83 = scmp.eq.s32.totalorder %s17, 1
      %p84 = por %p82, %p83
      %p86 = scmp.ne.s32.totalorder %s69, %s85
      %p87 = scmp.eq.s32.totalorder %s17, 0
      %p88 = por %p86, %p87
      %p89 = scmp.le.s32.totalorder 1, %s11
      %p90 = scmp.lt.s32.totalorder %s11, 3
      %p91 = pnand %p89, %p90
      %p92 = pneg %p91
      // Predicated region
      $region9: #{tpu_custom_call.1} parent=5 // pred_check
        _
      $region10: #{tpu_custom_call.1} parent=5 // pred_check_branch
        %94 = sbr.rel (%p91) target = $region12
      $region11: #{tpu_custom_call.1} parent=5 // pred_region
        %s95 = ssub.s32 %s11, 1
        // Predicated region
        $region13: #{tpu_custom_call.1} parent=11 // pred_check
          %p96 = pneg %p51
        $region14: #{tpu_custom_call.1} parent=11 // pred_check_branch
          %98 = sbr.rel (%p96) target = $region16
        $region15: #{tpu_custom_call.1} parent=11 // pred_region
          %s100 = ssub.s32 512, 512
          %101 = vsyncadd [#allocation4], %s100
          %s102 = sshll.u32 %s0, 4
          %s103 = int_to_ptr.vmem [resolvable:$true] %s102
          %108 = dma.vmem_to_smem %s103, 512, [#allocation2], [#allocation4], 128, 128, 8
        $region16: #{tpu_custom_call.1} parent=11 // pred_fallthru
          _
      $region12: #{tpu_custom_call.1} parent=5 // pred_fallthru
        _
      %p109 = scmp.lt.s32.totalorder %s11, 2
      // Predicated region
      $region17: #{tpu_custom_call.1} parent=5 // pred_check
        %p110 = pneg %p109
      $region18: #{tpu_custom_call.1} parent=5 // pred_check_branch
        %112 = sbr.rel (%p110) target = $region20
      $region19: #{tpu_custom_call.1} parent=5 // pred_region
        _
      $region20: #{tpu_custom_call.1} parent=5 // pred_fallthru
        _
      %p113 = scmp.le.s32.totalorder 1, %s11
      %p114 = scmp.lt.s32.totalorder %s11, 3
      %p115 = pnand %p113, %p114
      %p116 = pneg %p115
      // Predicated region
      $region21: #{tpu_custom_call.1} parent=5 // pred_check
        _
      $region22: #{tpu_custom_call.1} parent=5 // pred_check_branch
        %118 = sbr.rel (%p115) target = $region24
      $region23: #{tpu_custom_call.1} parent=5 // pred_region
        %s119 = ssub.s32 %s11, 1
        // Predicated region
        $region25: #{tpu_custom_call.1} parent=23 // pred_check
          %p120 = pneg %p51
        $region26: #{tpu_custom_call.1} parent=23 // pred_check_branch
          %122 = sbr.rel (%p120) target = $region28
        $region27: #{tpu_custom_call.1} parent=23 // pred_region
          %123 = dma.done [#allocation4], 512
        $region28: #{tpu_custom_call.1} parent=23 // pred_fallthru
          _
        %124 = sfence
        %p125 = pneg %p51
        %p126 = pneg %p48
        %p127 = pneg %p81
        %p128 = pneg %p78
        %s129 = sand.u32 %s68, 1
        %s130 = scalar_lea.sflag [#allocation3], %s129
        %s131 = sand.u32 %s68, 1
        %s132 = smul.addr %s131, 8
        %s133 = scalar_lea.vmem [#allocation5], %s132
        %s134 = smul.u32 %s23, 128
        %s135 = smul.u32 %s22, 8
        %s136 = ssub.s32 %s134, %s135
        %v137 = vlaneseq
        %v138 = vand.u32 %v137, 127
        %v139 = vadd.s32 %v138, 128
        %s140 = ssub.s32 %s136, 8
        %v141 = vstv %s140
        %v142 = vadd.s32 %v141, %v138
        %v143 = vadd.s32 %v141, %v139
        %v144 = vsub.s32 0, %v142
        %v145 = vsub.s32 0, %v143
        %vm146 = vcmp.lt.s32.totalorder %v144, 0
        %vm147 = vcmp.lt.s32.totalorder %v145, 0
        %v148 = vsel %vm146, 1, 0
        %v149 = vsel %vm147, 1, 0
        %v150 = vmul.u32 %v148, 16
        %v151 = vmul.u32 %v149, 16
        %v152 = vsub.s32 0, %v144
        %v153 = vsel %vm146, %v152, %v144
        %v154 = vsub.s32 0, %v145
        %v155 = vsel %vm147, %v154, %v145
        %vm156 = vcmp.lt.s32.totalorder %v153, 8
        %vm157 = vcmp.lt.s32.totalorder %v155, 8
        %vm158 = vcmp.gt.s32.totalorder %v153, 1
        %v159 = vsel %vm158, %v153, 1
        %vm160 = vcmp.gt.s32.totalorder %v155, 1
        %v161 = vsel %vm160, %v155, 1
        %v162 = vcvt.s32.f32 %v159
        %v163 = vcvt.s32.f32 %v161
        %v164 = vrcp.pop 8.0
        %v165 = vmul.f32 %v162, %v164
        %v166 = vmul.f32 %v163, %v164
        %v167 = vlog2.pop %v165
        %v168 = vmul.f32 %v167, 0.6931472
        %v169 = vlog2.pop %v166
        %v170 = vmul.f32 %v169, 0.6931472
        %v171 = vrcp.pop 2.7725887
        %v172 = vmul.f32 %v168, %v171
        %v173 = vmul.f32 %v170, %v171
        %v174 = vmul.f32 %v172, 8.0
        %v175 = vmul.f32 %v173, 8.0
        %v176 = vcvt.f32.s32.to.zero.pseudo %v174
        %v177 = vcvt.f32.s32.to.zero.pseudo %v175
        %v178 = vadd.s32 %v176, 8
        %v179 = vadd.s32 %v177, 8
        %vm180 = vcmp.lt.s32.totalorder %v178, 15
        %v181 = vsel %vm180, %v178, 15
        %vm182 = vcmp.lt.s32.totalorder %v179, 15
        %v183 = vsel %vm182, %v179, 15
        %v184 = vsel %vm156, %v153, %v181
        %v185 = vsel %vm157, %v155, %v183
        %v186 = vadd.s32 %v150, %v184
        %v187 = vadd.s32 %v151, %v185
        %s188 = sld [smem:[#allocation2 + %s21]]
        %v189 = vstv %s188
        %vm190 = vcmp.eq.s32.totalorder %v186, 1
        %vm191 = vcmp.eq.s32.totalorder %v187, 1
        %s192 = sshra.s32 %s21, 7
        %s193 = sand.u32 %s21, 127
        %s194 = sadd.s32 %s192, 1
        %s195 = smul.u32 %s194, 128
        %s196 = sshra.s32 %s21, 7
        %s197 = sand.u32 %s21, 127
        %s198 = sadd.s32 %s195, %s197
        %s199 = sld [smem:[#allocation2 + %s198]]
        %v200 = vstv %s199
        %v201 = vsel %vm190, %v200, %v189
        %v202 = vsel %vm191, %v200, %v189
        %vm203 = vcmp.eq.s32.totalorder %v186, 2
        %vm204 = vcmp.eq.s32.totalorder %v187, 2
        %s205 = sadd.s32 %s192, 2
        %s206 = smul.u32 %s205, 128
        %s207 = sadd.s32 %s206, %s197
        %s208 = sld [smem:[#allocation2 + %s207]]
        %v209 = vstv %s208
        %v210 = vsel %vm203, %v209, %v201
        %v211 = vsel %vm204, %v209, %v202
        %vm212 = vcmp.eq.s32.totalorder %v186, 3
        %vm213 = vcmp.eq.s32.totalorder %v187, 3
        %s214 = sadd.s32 %s192, 3
        %s215 = smul.u32 %s214, 128
        %s216 = sadd.s32 %s215, %s197
        %s217 = sld [smem:[#allocation2 + %s216]]
        %v218 = vstv %s217
        %v219 = vsel %vm212, %v218, %v210
        %v220 = vsel %vm213, %v218, %v211
        %vm221 = vcmp.eq.s32.totalorder %v186, 4
        %vm222 = vcmp.eq.s32.totalorder %v187, 4
        %s223 = sadd.s32 %s192, 4
        %s224 = smul.u32 %s223, 128
        %s225 = sadd.s32 %s224, %s197
        %s226 = sld [smem:[#allocation2 + %s225]]
        %v227 = vstv %s226
        %v228 = vsel %vm221, %v227, %v219
        %v229 = vsel %vm222, %v227, %v220
        %vm230 = vcmp.eq.s32.totalorder %v186, 5
        %vm231 = vcmp.eq.s32.totalorder %v187, 5
        %s232 = sadd.s32 %s192, 5
        %s233 = smul.u32 %s232, 128
        %s234 = sadd.s32 %s233, %s197
        %s235 = sld [smem:[#allocation2 + %s234]]
        %v236 = vstv %s235
        %v237 = vsel %vm230, %v236, %v228
        %v238 = vsel %vm231, %v236, %v229
        %vm239 = vcmp.eq.s32.totalorder %v186, 6
        %vm240 = vcmp.eq.s32.totalorder %v187, 6
        %s241 = sadd.s32 %s192, 6
        %s242 = smul.u32 %s241, 128
        %s243 = sadd.s32 %s242, %s197
        %s244 = sld [smem:[#allocation2 + %s243]]
        %v245 = vstv %s244
        %v246 = vsel %vm239, %v245, %v237
        %v247 = vsel %vm240, %v245, %v238
        %vm248 = vcmp.eq.s32.totalorder %v186, 7
        %vm249 = vcmp.eq.s32.totalorder %v187, 7
        %s250 = sadd.s32 %s192, 7
        %s251 = smul.u32 %s250, 128
        %s252 = sadd.s32 %s251, %s197
        %s253 = sld [smem:[#allocation2 + %s252]]
        %v254 = vstv %s253
        %v255 = vsel %vm248, %v254, %v246
        %v256 = vsel %vm249, %v254, %v247
        %vm257 = vcmp.eq.s32.totalorder %v186, 8
        %vm258 = vcmp.eq.s32.totalorder %v187, 8
        %s259 = sadd.s32 %s192, 8
        %s260 = smul.u32 %s259, 128
        %s261 = sadd.s32 %s260, %s197
        %s262 = sld [smem:[#allocation2 + %s261]]
        %v263 = vstv %s262
        %v264 = vsel %vm257, %v263, %v255
        %v265 = vsel %vm258, %v263, %v256
        %vm266 = vcmp.eq.s32.totalorder %v186, 9
        %vm267 = vcmp.eq.s32.totalorder %v187, 9
        %s268 = sadd.s32 %s192, 9
        %s269 = smul.u32 %s268, 128
        %s270 = sadd.s32 %s269, %s197
        %s271 = sld [smem:[#allocation2 + %s270]]
        %v272 = vstv %s271
        %v273 = vsel %vm266, %v272, %v264
        %v274 = vsel %vm267, %v272, %v265
        %vm275 = vcmp.eq.s32.totalorder %v186, 10
        %vm276 = vcmp.eq.s32.totalorder %v187, 10
        %s277 = sadd.s32 %s192, 10
        %s278 = smul.u32 %s277, 128
        %s279 = sadd.s32 %s278, %s197
        %s280 = sld [smem:[#allocation2 + %s279]]
        %v281 = vstv %s280
        %v282 = vsel %vm275, %v281, %v273
        %v283 = vsel %vm276, %v281, %v274
        %vm284 = vcmp.eq.s32.totalorder %v186, 11
        %vm285 = vcmp.eq.s32.totalorder %v187, 11
        %s286 = sadd.s32 %s192, 11
        %s287 = smul.u32 %s286, 128
        %s288 = sadd.s32 %s287, %s197
        %s289 = sld [smem:[#allocation2 + %s288]]
        %v290 = vstv %s289
        %v291 = vsel %vm284, %v290, %v282
        %v292 = vsel %vm285, %v290, %v283
        %vm293 = vcmp.eq.s32.totalorder %v186, 12
        %vm294 = vcmp.eq.s32.totalorder %v187, 12
        %s295 = sadd.s32 %s192, 12
        %s296 = smul.u32 %s295, 128
        %s297 = sadd.s32 %s296, %s197
        %s298 = sld [smem:[#allocation2 + %s297]]
        %v299 = vstv %s298
        %v300 = vsel %vm293, %v299, %v291
        %v301 = vsel %vm294, %v299, %v292
        %vm302 = vcmp.eq.s32.totalorder %v186, 13
        %vm303 = vcmp.eq.s32.totalorder %v187, 13
        %s304 = sadd.s32 %s192, 13
        %s305 = smul.u32 %s304, 128
        %s306 = sadd.s32 %s305, %s197
        %s307 = sld [smem:[#allocation2 + %s306]]
        %v308 = vstv %s307
        %v309 = vsel %vm302, %v308, %v300
        %v310 = vsel %vm303, %v308, %v301
        %vm311 = vcmp.eq.s32.totalorder %v186, 14
        %vm312 = vcmp.eq.s32.totalorder %v187, 14
        %s313 = sadd.s32 %s192, 14
        %s314 = smul.u32 %s313, 128
        %s315 = sadd.s32 %s314, %s197
        %s316 = sld [smem:[#allocation2 + %s315]]
        %v317 = vstv %s316
        %v318 = vsel %vm311, %v317, %v309
        %v319 = vsel %vm312, %v317, %v310
        %vm320 = vcmp.eq.s32.totalorder %v186, 15
        %vm321 = vcmp.eq.s32.totalorder %v187, 15
        %s322 = sadd.s32 %s192, 15
        %s323 = smul.u32 %s322, 128
        %s324 = sadd.s32 %s323, %s197
        %s325 = sld [smem:[#allocation2 + %s324]]
        %v326 = vstv %s325
        %v327 = vsel %vm320, %v326, %v318
        %v328 = vsel %vm321, %v326, %v319
        %vm329 = vcmp.eq.s32.totalorder %v186, 16
        %vm330 = vcmp.eq.s32.totalorder %v187, 16
        %s331 = sadd.s32 %s192, 16
        %s332 = smul.u32 %s331, 128
        %s333 = sadd.s32 %s332, %s197
        %s334 = sld [smem:[#allocation2 + %s333]]
        %v335 = vstv %s334
        %v336 = vsel %vm329, %v335, %v327
        %v337 = vsel %vm330, %v335, %v328
        %vm338 = vcmp.eq.s32.totalorder %v186, 17
        %vm339 = vcmp.eq.s32.totalorder %v187, 17
        %s340 = sadd.s32 %s192, 17
        %s341 = smul.u32 %s340, 128
        %s342 = sadd.s32 %s341, %s197
        %s343 = sld [smem:[#allocation2 + %s342]]
        %v344 = vstv %s343
        %v345 = vsel %vm338, %v344, %v336
        %v346 = vsel %vm339, %v344, %v337
        %vm347 = vcmp.eq.s32.totalorder %v186, 18
        %vm348 = vcmp.eq.s32.totalorder %v187, 18
        %s349 = sadd.s32 %s192, 18
        %s350 = smul.u32 %s349, 128
        %s351 = sadd.s32 %s350, %s197
        %s352 = sld [smem:[#allocation2 + %s351]]
        %v353 = vstv %s352
        %v354 = vsel %vm347, %v353, %v345
        %v355 = vsel %vm348, %v353, %v346
        %vm356 = vcmp.eq.s32.totalorder %v186, 19
        %vm357 = vcmp.eq.s32.totalorder %v187, 19
        %s358 = sadd.s32 %s192, 19
        %s359 = smul.u32 %s358, 128
        %s360 = sadd.s32 %s359, %s197
        %s361 = sld [smem:[#allocation2 + %s360]]
        %v362 = vstv %s361
        %v363 = vsel %vm356, %v362, %v354
        %v364 = vsel %vm357, %v362, %v355
        %vm365 = vcmp.eq.s32.totalorder %v186, 20
        %vm366 = vcmp.eq.s32.totalorder %v187, 20
        %s367 = sadd.s32 %s192, 20
        %s368 = smul.u32 %s367, 128
        %s369 = sadd.s32 %s368, %s197
        %s370 = sld [smem:[#allocation2 + %s369]]
        %v371 = vstv %s370
        %v372 = vsel %vm365, %v371, %v363
        %v373 = vsel %vm366, %v371, %v364
        %vm374 = vcmp.eq.s32.totalorder %v186, 21
        %vm375 = vcmp.eq.s32.totalorder %v187, 21
        %s376 = sadd.s32 %s192, 21
        %s377 = smul.u32 %s376, 128
        %s378 = sadd.s32 %s377, %s197
        %s379 = sld [smem:[#allocation2 + %s378]]
        %v380 = vstv %s379
        %v381 = vsel %vm374, %v380, %v372
        %v382 = vsel %vm375, %v380, %v373
        %vm383 = vcmp.eq.s32.totalorder %v186, 22
        %vm384 = vcmp.eq.s32.totalorder %v187, 22
        %s385 = sadd.s32 %s192, 22
        %s386 = smul.u32 %s385, 128
        %s387 = sadd.s32 %s386, %s197
        %s388 = sld [smem:[#allocation2 + %s387]]
        %v389 = vstv %s388
        %v390 = vsel %vm383, %v389, %v381
        %v391 = vsel %vm384, %v389, %v382
        %vm392 = vcmp.eq.s32.totalorder %v186, 23
        %vm393 = vcmp.eq.s32.totalorder %v187, 23
        %s394 = sadd.s32 %s192, 23
        %s395 = smul.u32 %s394, 128
        %s396 = sadd.s32 %s395, %s197
        %s397 = sld [smem:[#allocation2 + %s396]]
        %v398 = vstv %s397
        %v399 = vsel %vm392, %v398, %v390
        %v400 = vsel %vm393, %v398, %v391
        %vm401 = vcmp.eq.s32.totalorder %v186, 24
        %vm402 = vcmp.eq.s32.totalorder %v187, 24
        %s403 = sadd.s32 %s192, 24
        %s404 = smul.u32 %s403, 128
        %s405 = sadd.s32 %s404, %s197
        %s406 = sld [smem:[#allocation2 + %s405]]
        %v407 = vstv %s406
        %v408 = vsel %vm401, %v407, %v399
        %v409 = vsel %vm402, %v407, %v400
        %vm410 = vcmp.eq.s32.totalorder %v186, 25
        %vm411 = vcmp.eq.s32.totalorder %v187, 25
        %s412 = sadd.s32 %s192, 25
        %s413 = smul.u32 %s412, 128
        %s414 = sadd.s32 %s413, %s197
        %s415 = sld [smem:[#allocation2 + %s414]]
        %v416 = vstv %s415
        %v417 = vsel %vm410, %v416, %v408
        %v418 = vsel %vm411, %v416, %v409
        %vm419 = vcmp.eq.s32.totalorder %v186, 26
        %vm420 = vcmp.eq.s32.totalorder %v187, 26
        %s421 = sadd.s32 %s192, 26
        %s422 = smul.u32 %s421, 128
        %s423 = sadd.s32 %s422, %s197
        %s424 = sld [smem:[#allocation2 + %s423]]
        %v425 = vstv %s424
        %v426 = vsel %vm419, %v425, %v417
        %v427 = vsel %vm420, %v425, %v418
        %vm428 = vcmp.eq.s32.totalorder %v186, 27
        %vm429 = vcmp.eq.s32.totalorder %v187, 27
        %s430 = sadd.s32 %s192, 27
        %s431 = smul.u32 %s430, 128
        %s432 = sadd.s32 %s431, %s197
        %s433 = sld [smem:[#allocation2 + %s432]]
        %v434 = vstv %s433
        %v435 = vsel %vm428, %v434, %v426
        %v436 = vsel %vm429, %v434, %v427
        %vm437 = vcmp.eq.s32.totalorder %v186, 28
        %vm438 = vcmp.eq.s32.totalorder %v187, 28
        %s439 = sadd.s32 %s192, 28
        %s440 = smul.u32 %s439, 128
        %s441 = sadd.s32 %s440, %s197
        %s442 = sld [smem:[#allocation2 + %s441]]
        %v443 = vstv %s442
        %v444 = vsel %vm437, %v443, %v435
        %v445 = vsel %vm438, %v443, %v436
        %vm446 = vcmp.eq.s32.totalorder %v186, 29
        %vm447 = vcmp.eq.s32.totalorder %v187, 29
        %s448 = sadd.s32 %s192, 29
        %s449 = smul.u32 %s448, 128
        %s450 = sadd.s32 %s449, %s197
        %s451 = sld [smem:[#allocation2 + %s450]]
        %v452 = vstv %s451
        %v453 = vsel %vm446, %v452, %v444
        %v454 = vsel %vm447, %v452, %v445
        %vm455 = vcmp.eq.s32.totalorder %v186, 30
        %vm456 = vcmp.eq.s32.totalorder %v187, 30
        %s457 = sadd.s32 %s192, 30
        %s458 = smul.u32 %s457, 128
        %s459 = sadd.s32 %s458, %s197
        %s460 = sld [smem:[#allocation2 + %s459]]
        %v461 = vstv %s460
        %v462 = vsel %vm455, %v461, %v453
        %v463 = vsel %vm456, %v461, %v454
        %vm464 = vcmp.eq.s32.totalorder %v186, 31
        %vm465 = vcmp.eq.s32.totalorder %v187, 31
        %s466 = sadd.s32 %s192, 31
        %s467 = smul.u32 %s466, 128
        %s468 = sadd.s32 %s467, %s197
        %s469 = sld [smem:[#allocation2 + %s468]]
        %v470 = vstv %s469
        %v471 = vsel %vm464, %v470, %v462
        %v472 = vsel %vm465, %v470, %v463
        %s474 = sor.u32 256, 120
        %475 = vrot.lane.b32.xlu0 %v471, %s474
        %v476 = vpop.permute.xlu0 %475
        %s478 = sor.u32 256, 120
        %479 = vrot.lane.b32.xlu0 %v472, %s478
        %v480 = vpop.permute.xlu0 %479
        %v481 = vlaneseq
        %v482 = vshrl.u32 %v481, 7
        %v483 = vadd.s32 %v482, 120
        %vm484 = vcmp.lt.s32.totalorder %v138, %v483
        %v485 = vsel %vm484, %v476, %v480
        %486 = vst [vmem:[%s133] sm:$0xff] %v485
        %s487 = sand.u32 %s68, 1
        %s488 = scalar_lea.sflag [#allocation3], %s487
        %s489 = sand.u32 %s68, 1
        %s490 = smul.addr %s489, 8
        %s491 = scalar_lea.vmem [#allocation5], %s490
        // Predicated region
        $region29: #{tpu_custom_call.1} parent=23 // pred_check
          %p492 = pneg %p78
        $region30: #{tpu_custom_call.1} parent=23 // pred_check_branch
          %494 = sbr.rel (%p492) target = $region32
        $region31: #{tpu_custom_call.1} parent=23 // pred_region
          %s496 = ssub.s32 128, 128
          %497 = vsyncadd %s488, %s496
          %s498 = sadd.s32 %s23, %s22
          %s499 = sadd.s32 %s498, %s21
          %s500 = smul.addr %s499, 128
          %s501 = scalar_lea.hbm %s1, %s500
          %s503 = sshll.u32 %s491, 4
          %s504 = int_to_ptr.vmem [resolvable:$true] %s503
          %506 = dma.vmem_to_hbm [thread:$0]  %s504, 128, %s501, %s488
        $region32: #{tpu_custom_call.1} parent=23 // pred_fallthru
          _
      $region24: #{tpu_custom_call.1} parent=5 // pred_fallthru
        _
      %p507 = scmp.le.s32.totalorder 2, %s11
      // Predicated region
      $region33: #{tpu_custom_call.1} parent=5 // pred_check
        %p508 = pneg %p507
      $region34: #{tpu_custom_call.1} parent=5 // pred_check_branch
        %510 = sbr.rel (%p508) target = $region36
      $region35: #{tpu_custom_call.1} parent=5 // pred_region
        %s511 = ssub.s32 %s11, 2
        // Predicated region
        $region37: #{tpu_custom_call.1} parent=35 // pred_check
          %p512 = pneg %p84
        $region38: #{tpu_custom_call.1} parent=35 // pred_check_branch
          %514 = sbr.rel (%p512) target = $region40
        $region39: #{tpu_custom_call.1} parent=35 // pred_region
          %s515 = sand.u32 %s69, 1
          %s516 = scalar_lea.sflag [#allocation3], %s515
          %s517 = sand.u32 %s69, 1
          %s518 = smul.addr %s517, 8
          %s519 = scalar_lea.vmem [#allocation5], %s518
          %520 = dma.done %s516, 128
        $region40: #{tpu_custom_call.1} parent=35 // pred_fallthru
          _
      $region36: #{tpu_custom_call.1} parent=5 // pred_fallthru
        _
    $region6: #{tpu_custom_call.1} parent=1 // loop_footer
      %s15 = sadd.s32 1, %s11
    $region7: #{tpu_custom_call.1} parent=1 // loop_footer_branch
      %10 = sbr.rel target = $region3
    $region8: #{tpu_custom_call.1} parent=1 // loop_exit
      _
    %521 = vsyncpa [#allocation3], 1
    %s522 = scalar_lea.sflag [#allocation3], 1
    %523 = vsyncpa %s522, 1
    %524 = vsyncpa [#allocation4], 1
    %s525 = scalar_lea.sflag [#allocation4], 1
    %526 = vsyncpa %s525, 1

</llo_original>
